<compile_context>
chip_gen: v6e
topology: v6e:2x2x1
jax: 0.10.0
libtpu: 0.0.40
codegen_flags: <defaults>
</compile_context>

<pallas_src>
import functools

import jax
import jax.numpy as jnp
from jax.experimental import pallas as pl
from jax.experimental.pallas import tpu as pltpu

_T_KD = 20.0           # distillation temperature
_T_THR = 2.0           # threshold-softmax temperature
_INV_T_KD = 1.0 / _T_KD
_INV_T_THR = 1.0 / _T_THR


def _dyn_mt6_kernel(t1_ref, t2_ref, t3_ref, t4_ref, t5_ref, t6_ref,
                    st_ref, tgt_ref, out_ref, *, n_valid):
    st = st_ref[...].astype(jnp.float32)       # student logits  [TN, C]
    tgt = tgt_ref[...]                         # targets         [TN, 1] int32
    TN, C = st.shape

    # Valid-row mask derived in-kernel (no padded HBM copies).  OOB tail rows may contain garbage;
    # every use is guarded with jnp.where so inf/NaN in those rows cannot leak into the sums.
    row_ids = pl.program_id(0) * TN + jax.lax.broadcasted_iota(jnp.int32, (TN, 1), 0)
    valid = row_ids < n_valid                  # [TN, 1] bool

    iota = jax.lax.broadcasted_iota(jnp.int32, (TN, C), 1)
    onehot = iota == tgt                       # [TN, C] bool
    neg_inf = jnp.float32(-jnp.inf)

    def at_target(x):                          # x[i, targets[i]] -> [TN, 1]
        return jnp.sum(jnp.where(onehot, x, 0.0), axis=-1, keepdims=True)

    # ---- student terms (shared by all 7 teacher terms) --------------------------------------
    s_max = jnp.max(st, axis=-1, keepdims=True)
    s_shift = st - s_max
    s_lse = jnp.log(jnp.sum(jnp.exp(s_shift), axis=-1, keepdims=True)) + s_max
    ce = s_lse - at_target(st)                                   # cross entropy  [TN, 1]

    q_shift = s_shift * _INV_T_KD                                # max(q_shift) == 0
    q_lse = jnp.log(jnp.sum(jnp.exp(q_shift), axis=-1, keepdims=True))
    log_q = q_shift - q_lse                                      # log_softmax(st / T)  [TN, C]

    # ---- per-teacher terms (one cross-lane max + two cross-lane sums each) -------------------
    def teacher_terms(x, at_t):
        rest_max = jnp.max(jnp.where(onehot, neg_inf, x), axis=-1, keepdims=True)
        row_max = jnp.maximum(at_t, rest_max)                    # VPU max, == jnp.max(x, -1)
        # margin (top1 - top2 gap) when the target class holds the max, else 0; matches the
        # sort-based tie semantics of the reference exactly (same f32 equality compare).
        margin = jnp.where(at_t == row_max, row_max - rest_max, 0.0)          # [TN, 1]
        # soft-target CE at temperature T; p_soft never materialized.
        p_exp = jnp.exp((x - row_max) * _INV_T_KD)                            # [TN, C]
        sum_p = jnp.sum(p_exp, axis=-1, keepdims=True)
        kd = -(jnp.sum(p_exp * log_q, axis=-1, keepdims=True) / sum_p) * (_T_KD * _T_KD)
        return margin, kd, row_max

    margins, at_ts, kds = [], [], []
    mimic_acc = None          # streamed sum of the six teacher tiles (f32)
    at_mimic = None           # streamed sum of the six at_target values
    t_max = None              # per-row max over the six teachers, padded rows -> -inf
    for r in (t1_ref, t2_ref, t3_ref, t4_ref, t5_ref, t6_ref):
        x = r[...].astype(jnp.float32)
        a = at_target(x)
        m, k, rmax = teacher_terms(x, a)
        margins.append(m)
        at_ts.append(a)
        kds.append(k)
        masked_rmax = jnp.where(valid, rmax, neg_inf)
        t_max = masked_rmax if t_max is None else jnp.maximum(t_max, masked_rmax)
        mimic_acc = x if mimic_acc is None else mimic_acc + x
        at_mimic = a if at_mimic is None else at_mimic + a

    # mimic teacher = mean of the six teachers; its target value is derived (no extra reduction)
    mimic = mimic_acc * (1.0 / 6.0)
    at_mimic = at_mimic * (1.0 / 6.0)
    m_m, kd_m, _ = teacher_terms(mimic, at_mimic)
    margins.append(m_m)
    at_ts.append(at_mimic)
    kds.append(kd_m)

    # ---- threshold softmax + factored loss ----------------------------------------------------
    #   n_loss = ce + (0.8 / max_preds) * sum_j thr_j * at_t_j * (kd_j - ce)
    # max_preds is finalized in the wrapper from the per-tile teacher maxima.
    mmax = margins[0]
    for m in margins[1:]:
        mmax = jnp.maximum(mmax, m)
    es = [jnp.exp((m - mmax) * _INV_T_THR) for m in margins]     # 7 x [TN, 1]
    denom = es[0]
    num = es[0] * at_ts[0] * (kds[0] - ce)
    for j in range(1, 7):
        denom = denom + es[j]
        num = num + es[j] * at_ts[j] * (kds[j] - ce)
    wterm = num / denom                                          # [TN, 1]

    s_ce = jnp.sum(jnp.where(valid, ce, 0.0))
    s_w = jnp.sum(jnp.where(valid, wterm, 0.0))
    s_tmax = jnp.max(t_max)                                      # tile max over 6 teachers

    # pack the three per-tile scalars into one lane-dense (1, 8, 128) block (single unmasked vst)
    lane = jax.lax.broadcasted_iota(jnp.int32, (1, 8, 128), 2)
    blk = jnp.where(lane == 0, s_ce,
                    jnp.where(lane == 1, s_w,
                              jnp.where(lane == 2, s_tmax, 0.0)))
    out_ref[...] = blk


def _round_up(x, m):
    return ((x + m - 1) // m) * m


def _vmem_capacity_bytes():
    try:
        info = pltpu.get_tpu_info()
        cap = getattr(info, "vmem_capacity_bytes", None)
        if cap:
            return int(cap)
    except Exception:
        pass
    return 64 * 1024 * 1024      # conservative fallback (v7x per-TC physical VMEM)


def _sublane_multiple(*dtypes):
    m = 8
    for dt in dtypes:
        isz = jnp.dtype(dt).itemsize
        m = max(m, {4: 8, 2: 16, 1: 32}.get(isz, 8))
    return m


def _pick_tile_rows(n, c, sub, budget_bytes, itemsize):
    # 7 logit inputs double-buffered (native dtype) + ~6 live [TN, C] f32 temporaries.
    per_row = (7 * 2 * itemsize + 6 * 4) * max(c, 1)
    tn = budget_bytes // per_row
    tn = (tn // sub) * sub
    tn = max(sub, min(tn, 4096))
    # keep >= 2 grid steps when the batch allows it (v7x's two TensorCores both get work;
    # harmless on 1-TC chips)
    if n > sub:
        half = _round_up(-(-n // 2), sub)
        tn = min(tn, half)
    tn = min(tn, _round_up(n, sub))
    return max(sub, tn)


def dynamic_multi_teacher6(o1, o2, o3, o4, o5, o6, out_s, targets, *, tile_rows=None):
    """Multi-teacher distillation loss. o*: [N, C] logits, out_s: [N, C], targets: [N] int."""
    teachers = (o1, o2, o3, o4, o5, o6)
    N, C = o1.shape

    dtypes = [t.dtype for t in teachers] + [out_s.dtype]
    sub = _sublane_multiple(*dtypes)
    itemsize = max(jnp.dtype(dt).itemsize for dt in dtypes)

    # generation-aware VMEM sizing: ~90 MiB limit / ~48 MiB tile budget on 128-MiB chips
    # (v5e/v6e), ~44 MiB / ~24 MiB on v7x (64 MiB per TensorCore).
    vmem_cap = _vmem_capacity_bytes()
    vmem_limit = int(min(vmem_cap * 0.70, 96 * 1024 * 1024))
    budget = int(min(vmem_limit * 0.55, 48 * 1024 * 1024))

    if tile_rows is not None:
        TN = max(sub, _round_up(tile_rows, sub))
    else:
        TN = _pick_tile_rows(N, C, sub, budget, itemsize)
    num_tiles = -(-N // TN)

    tgt2d = targets.astype(jnp.int32).reshape(N, 1)

    row_spec = pl.BlockSpec((TN, C), lambda i: (i, 0))
    tgt_spec = pl.BlockSpec((TN, 1), lambda i: (i, 0))
    out_spec = pl.BlockSpec((1, 8, 128), lambda i: (i, 0, 0))

    tile_out = pl.pallas_call(
        functools.partial(_dyn_mt6_kernel, n_valid=N),
        grid=(num_tiles,),
        in_specs=[row_spec] * 7 + [tgt_spec],
        out_specs=out_spec,
        out_shape=jax.ShapeDtypeStruct((num_tiles, 8, 128), jnp.float32),
        compiler_params=pltpu.CompilerParams(
            dimension_semantics=("parallel",),
            vmem_limit_bytes=vmem_limit),
    )(*teachers, out_s, tgt2d)

    total_ce = jnp.sum(tile_out[:, 0, 0])
    total_w = jnp.sum(tile_out[:, 0, 1])
    max_preds = jnp.max(tile_out[:, 0, 2])        # global max over the 6 teachers, from the kernel
    return (total_ce + (0.8 / max_preds) * total_w) / jnp.float32(N)


def _reference(teachers, out_s, targets):
    """Pure-JAX reference of the PyTorch Dynamic_MultiTeacher6 forward (vectorized)."""
    o = list(teachers)
    N, C = out_s.shape
    mimic = (o[0] + o[1] + o[2] + o[3] + o[4] + o[5]) / 6.0
    onehot = jax.nn.one_hot(targets, C, dtype=jnp.float32)
    at_t = lambda x: jnp.sum(x * onehot, axis=-1)

    def margin(x):
        srt = jnp.sort(x, axis=-1)[:, ::-1]
        return jnp.where(at_t(x) == srt[:, 0], srt[:, 0] - srt[:, 1], 0.0)

    all_t = o + [mimic]
    d = jnp.stack([margin(x) for x in all_t], axis=-1)            # [N, 7]
    out_threshold = jax.nn.softmax(d / _T_THR, axis=-1)
    max_preds = jnp.max(jnp.stack(o))

    ce = jax.nn.logsumexp(out_s, axis=-1) - at_t(out_s)
    log_q = jax.nn.log_softmax(out_s / _T_KD, axis=-1)

    def ce_kd(teacher):
        w = at_t(teacher) / max_preds
        kd = -jnp.sum(jax.nn.softmax(teacher / _T_KD, axis=-1) * log_q, axis=-1) * _T_KD * _T_KD
        return (1.0 - 0.8 * w) * ce + 0.8 * w * kd

    losses = [ce_kd(x) for x in all_t]
    n_loss = sum(out_threshold[:, j] * losses[j] for j in range(7))
    return jnp.mean(n_loss)


if __name__ == "__main__":
    key = jax.random.PRNGKey(0)
    ks = jax.random.split(key, 8)
    N, C = 8, 16
    teachers = [jax.random.normal(ks[i], (N, C), dtype=jnp.float32) * 3.0 for i in range(6)]
    out_s = jax.random.normal(ks[6], (N, C), dtype=jnp.float32) * 3.0
    targets = jax.random.randint(ks[7], (N,), 0, C, dtype=jnp.int32)

    loss = dynamic_multi_teacher6(*teachers, out_s, targets)
    jax.block_until_ready(loss)

    ref = _reference(teachers, out_s, targets)
    if not jnp.allclose(loss, ref, rtol=2e-3, atol=1e-2):
        raise AssertionError((float(loss), float(ref)))

    print("KERNEL_OK")
</pallas_src>

<mosaic_0001>
module attributes {stable_mosaic.version = 11 : i64} {
  func.func @_dyn_mt6_kernel(%arg0: i32, %arg1: memref<8x16xf32, #tpu.memory_space<vmem>>, %arg2: memref<8x16xf32, #tpu.memory_space<vmem>>, %arg3: memref<8x16xf32, #tpu.memory_space<vmem>>, %arg4: memref<8x16xf32, #tpu.memory_space<vmem>>, %arg5: memref<8x16xf32, #tpu.memory_space<vmem>>, %arg6: memref<8x16xf32, #tpu.memory_space<vmem>>, %arg7: memref<8x16xf32, #tpu.memory_space<vmem>>, %arg8: memref<8x1xi32, #tpu.memory_space<vmem>>, %arg9: memref<1x8x128xf32, #tpu.memory_space<vmem>>) attributes {dimension_semantics = [#tpu.dimension_semantics<parallel>], iteration_bounds = array<i64: 1>, scalar_prefetch = 0 : i64, scratch_operands = 0 : i64, tpu.core_type = #tpu.core_type<tc>, window_params = [{transform_indices = @transform_0, window_bounds = array<i64: 8, 16>}, {transform_indices = @transform_1, window_bounds = array<i64: 8, 16>}, {transform_indices = @transform_2, window_bounds = array<i64: 8, 16>}, {transform_indices = @transform_3, window_bounds = array<i64: 8, 16>}, {transform_indices = @transform_4, window_bounds = array<i64: 8, 16>}, {transform_indices = @transform_5, window_bounds = array<i64: 8, 16>}, {transform_indices = @transform_6, window_bounds = array<i64: 8, 16>}, {transform_indices = @transform_7, window_bounds = array<i64: 8, 1>}, {transform_indices = @transform_8, window_bounds = array<i64: 1, 8, 128>}]} {
    %c0 = arith.constant 0 : index
    %c0_0 = arith.constant 0 : index
    %0 = vector.load %arg7[%c0, %c0_0] : memref<8x16xf32, #tpu.memory_space<vmem>>, vector<8x16xf32>
    %c0_1 = arith.constant 0 : index
    %c0_2 = arith.constant 0 : index
    %1 = vector.load %arg8[%c0_1, %c0_2] : memref<8x1xi32, #tpu.memory_space<vmem>>, vector<8x1xi32>
    %c8_i32 = arith.constant 8 : i32
    %2 = arith.muli %arg0, %c8_i32 : i32
    %3 = tpu.iota {dimensions = array<i32: 0>} : vector<8x1xi32>
    %4 = vector.broadcast %2 : i32 to vector<8x1xi32>
    %5 = arith.addi %4, %3 : vector<8x1xi32>
    %c8_i32_3 = arith.constant 8 : i32
    %6 = vector.broadcast %c8_i32_3 : i32 to vector<8x1xi32>
    %7 = arith.cmpi slt, %5, %6 : vector<8x1xi32>
    %8 = tpu.iota {dimensions = array<i32: 1>} : vector<8x16xi32>
    %9 = vector.broadcast %1 : vector<8x1xi32> to vector<8x16xi32>
    %10 = arith.cmpi eq, %8, %9 : vector<8x16xi32>
    %cst = arith.constant dense<0xFF800000> : vector<8xf32>
    %11 = vector.multi_reduction <maximumf>, %0, %cst [1] : vector<8x16xf32> to vector<8xf32>
    %12 = vector.shape_cast %11 : vector<8xf32> to vector<8x1xf32>
    %13 = vector.broadcast %12 : vector<8x1xf32> to vector<8x16xf32>
    %14 = arith.subf %0, %13 : vector<8x16xf32>
    %15 = math.exp %14 : vector<8x16xf32>
    %cst_4 = arith.constant dense<0.000000e+00> : vector<8xf32>
    %16 = vector.multi_reduction <add>, %15, %cst_4 [1] : vector<8x16xf32> to vector<8xf32>
    %17 = vector.shape_cast %16 : vector<8xf32> to vector<8x1xf32>
    %18 = math.log %17 : vector<8x1xf32>
    %19 = arith.addf %18, %12 : vector<8x1xf32>
    %cst_5 = arith.constant 0.000000e+00 : f32
    %20 = vector.broadcast %cst_5 : f32 to vector<8x16xf32>
    %21 = arith.select %10, %0, %20 : vector<8x16xi1>, vector<8x16xf32>
    %cst_6 = arith.constant dense<0.000000e+00> : vector<8xf32>
    %22 = vector.multi_reduction <add>, %21, %cst_6 [1] : vector<8x16xf32> to vector<8xf32>
    %23 = vector.shape_cast %22 : vector<8xf32> to vector<8x1xf32>
    %24 = arith.subf %19, %23 : vector<8x1xf32>
    %cst_7 = arith.constant 5.000000e-02 : f32
    %25 = vector.broadcast %cst_7 : f32 to vector<8x16xf32>
    %26 = arith.mulf %14, %25 : vector<8x16xf32>
    %27 = math.exp %26 : vector<8x16xf32>
    %cst_8 = arith.constant dense<0.000000e+00> : vector<8xf32>
    %28 = vector.multi_reduction <add>, %27, %cst_8 [1] : vector<8x16xf32> to vector<8xf32>
    %29 = vector.shape_cast %28 : vector<8xf32> to vector<8x1xf32>
    %30 = math.log %29 : vector<8x1xf32>
    %31 = vector.broadcast %30 : vector<8x1xf32> to vector<8x16xf32>
    %32 = arith.subf %26, %31 : vector<8x16xf32>
    %c0_9 = arith.constant 0 : index
    %c0_10 = arith.constant 0 : index
    %33 = vector.load %arg1[%c0_9, %c0_10] : memref<8x16xf32, #tpu.memory_space<vmem>>, vector<8x16xf32>
    %cst_11 = arith.constant 0.000000e+00 : f32
    %34 = vector.broadcast %cst_11 : f32 to vector<8x16xf32>
    %35 = arith.select %10, %33, %34 : vector<8x16xi1>, vector<8x16xf32>
    %cst_12 = arith.constant dense<0.000000e+00> : vector<8xf32>
    %36 = vector.multi_reduction <add>, %35, %cst_12 [1] : vector<8x16xf32> to vector<8xf32>
    %37 = vector.shape_cast %36 : vector<8xf32> to vector<8x1xf32>
    %cst_13 = arith.constant 0xFF800000 : f32
    %38 = vector.broadcast %cst_13 : f32 to vector<8x16xf32>
    %39 = arith.select %10, %38, %33 : vector<8x16xi1>, vector<8x16xf32>
    %cst_14 = arith.constant dense<0xFF800000> : vector<8xf32>
    %40 = vector.multi_reduction <maximumf>, %39, %cst_14 [1] : vector<8x16xf32> to vector<8xf32>
    %41 = vector.shape_cast %40 : vector<8xf32> to vector<8x1xf32>
    %42 = arith.maximumf %37, %41 : vector<8x1xf32>
    %43 = arith.cmpf oeq, %37, %42 : vector<8x1xf32>
    %44 = arith.subf %42, %41 : vector<8x1xf32>
    %cst_15 = arith.constant 0.000000e+00 : f32
    %45 = vector.broadcast %cst_15 : f32 to vector<8x1xf32>
    %46 = arith.select %43, %44, %45 : vector<8x1xi1>, vector<8x1xf32>
    %47 = vector.broadcast %42 : vector<8x1xf32> to vector<8x16xf32>
    %48 = arith.subf %33, %47 : vector<8x16xf32>
    %cst_16 = arith.constant 5.000000e-02 : f32
    %49 = vector.broadcast %cst_16 : f32 to vector<8x16xf32>
    %50 = arith.mulf %48, %49 : vector<8x16xf32>
    %51 = math.exp %50 : vector<8x16xf32>
    %cst_17 = arith.constant dense<0.000000e+00> : vector<8xf32>
    %52 = vector.multi_reduction <add>, %51, %cst_17 [1] : vector<8x16xf32> to vector<8xf32>
    %53 = vector.shape_cast %52 : vector<8xf32> to vector<8x1xf32>
    %54 = arith.mulf %51, %32 : vector<8x16xf32>
    %cst_18 = arith.constant dense<0.000000e+00> : vector<8xf32>
    %55 = vector.multi_reduction <add>, %54, %cst_18 [1] : vector<8x16xf32> to vector<8xf32>
    %56 = vector.shape_cast %55 : vector<8xf32> to vector<8x1xf32>
    %57 = arith.divf %56, %53 : vector<8x1xf32>
    %cst_19 = arith.constant 0.000000e+00 : f32
    %58 = vector.broadcast %cst_19 : f32 to vector<8x1xf32>
    %59 = arith.subf %58, %57 : vector<8x1xf32>
    %cst_20 = arith.constant 4.000000e+02 : f32
    %60 = vector.broadcast %cst_20 : f32 to vector<8x1xf32>
    %61 = arith.mulf %59, %60 : vector<8x1xf32>
    %cst_21 = arith.constant 0xFF800000 : f32
    %62 = vector.broadcast %cst_21 : f32 to vector<8x1xf32>
    %63 = arith.select %7, %42, %62 : vector<8x1xi1>, vector<8x1xf32>
    %c0_22 = arith.constant 0 : index
    %c0_23 = arith.constant 0 : index
    %64 = vector.load %arg2[%c0_22, %c0_23] : memref<8x16xf32, #tpu.memory_space<vmem>>, vector<8x16xf32>
    %cst_24 = arith.constant 0.000000e+00 : f32
    %65 = vector.broadcast %cst_24 : f32 to vector<8x16xf32>
    %66 = arith.select %10, %64, %65 : vector<8x16xi1>, vector<8x16xf32>
    %cst_25 = arith.constant dense<0.000000e+00> : vector<8xf32>
    %67 = vector.multi_reduction <add>, %66, %cst_25 [1] : vector<8x16xf32> to vector<8xf32>
    %68 = vector.shape_cast %67 : vector<8xf32> to vector<8x1xf32>
    %cst_26 = arith.constant 0xFF800000 : f32
    %69 = vector.broadcast %cst_26 : f32 to vector<8x16xf32>
    %70 = arith.select %10, %69, %64 : vector<8x16xi1>, vector<8x16xf32>
    %cst_27 = arith.constant dense<0xFF800000> : vector<8xf32>
    %71 = vector.multi_reduction <maximumf>, %70, %cst_27 [1] : vector<8x16xf32> to vector<8xf32>
    %72 = vector.shape_cast %71 : vector<8xf32> to vector<8x1xf32>
    %73 = arith.maximumf %68, %72 : vector<8x1xf32>
    %74 = arith.cmpf oeq, %68, %73 : vector<8x1xf32>
    %75 = arith.subf %73, %72 : vector<8x1xf32>
    %cst_28 = arith.constant 0.000000e+00 : f32
    %76 = vector.broadcast %cst_28 : f32 to vector<8x1xf32>
    %77 = arith.select %74, %75, %76 : vector<8x1xi1>, vector<8x1xf32>
    %78 = vector.broadcast %73 : vector<8x1xf32> to vector<8x16xf32>
    %79 = arith.subf %64, %78 : vector<8x16xf32>
    %cst_29 = arith.constant 5.000000e-02 : f32
    %80 = vector.broadcast %cst_29 : f32 to vector<8x16xf32>
    %81 = arith.mulf %79, %80 : vector<8x16xf32>
    %82 = math.exp %81 : vector<8x16xf32>
    %cst_30 = arith.constant dense<0.000000e+00> : vector<8xf32>
    %83 = vector.multi_reduction <add>, %82, %cst_30 [1] : vector<8x16xf32> to vector<8xf32>
    %84 = vector.shape_cast %83 : vector<8xf32> to vector<8x1xf32>
    %85 = arith.mulf %82, %32 : vector<8x16xf32>
    %cst_31 = arith.constant dense<0.000000e+00> : vector<8xf32>
    %86 = vector.multi_reduction <add>, %85, %cst_31 [1] : vector<8x16xf32> to vector<8xf32>
    %87 = vector.shape_cast %86 : vector<8xf32> to vector<8x1xf32>
    %88 = arith.divf %87, %84 : vector<8x1xf32>
    %cst_32 = arith.constant 0.000000e+00 : f32
    %89 = vector.broadcast %cst_32 : f32 to vector<8x1xf32>
    %90 = arith.subf %89, %88 : vector<8x1xf32>
    %cst_33 = arith.constant 4.000000e+02 : f32
    %91 = vector.broadcast %cst_33 : f32 to vector<8x1xf32>
    %92 = arith.mulf %90, %91 : vector<8x1xf32>
    %cst_34 = arith.constant 0xFF800000 : f32
    %93 = vector.broadcast %cst_34 : f32 to vector<8x1xf32>
    %94 = arith.select %7, %73, %93 : vector<8x1xi1>, vector<8x1xf32>
    %95 = arith.maximumf %63, %94 : vector<8x1xf32>
    %96 = arith.addf %33, %64 : vector<8x16xf32>
    %97 = arith.addf %37, %68 : vector<8x1xf32>
    %c0_35 = arith.constant 0 : index
    %c0_36 = arith.constant 0 : index
    %98 = vector.load %arg3[%c0_35, %c0_36] : memref<8x16xf32, #tpu.memory_space<vmem>>, vector<8x16xf32>
    %cst_37 = arith.constant 0.000000e+00 : f32
    %99 = vector.broadcast %cst_37 : f32 to vector<8x16xf32>
    %100 = arith.select %10, %98, %99 : vector<8x16xi1>, vector<8x16xf32>
    %cst_38 = arith.constant dense<0.000000e+00> : vector<8xf32>
    %101 = vector.multi_reduction <add>, %100, %cst_38 [1] : vector<8x16xf32> to vector<8xf32>
    %102 = vector.shape_cast %101 : vector<8xf32> to vector<8x1xf32>
    %cst_39 = arith.constant 0xFF800000 : f32
    %103 = vector.broadcast %cst_39 : f32 to vector<8x16xf32>
    %104 = arith.select %10, %103, %98 : vector<8x16xi1>, vector<8x16xf32>
    %cst_40 = arith.constant dense<0xFF800000> : vector<8xf32>
    %105 = vector.multi_reduction <maximumf>, %104, %cst_40 [1] : vector<8x16xf32> to vector<8xf32>
    %106 = vector.shape_cast %105 : vector<8xf32> to vector<8x1xf32>
    %107 = arith.maximumf %102, %106 : vector<8x1xf32>
    %108 = arith.cmpf oeq, %102, %107 : vector<8x1xf32>
    %109 = arith.subf %107, %106 : vector<8x1xf32>
    %cst_41 = arith.constant 0.000000e+00 : f32
    %110 = vector.broadcast %cst_41 : f32 to vector<8x1xf32>
    %111 = arith.select %108, %109, %110 : vector<8x1xi1>, vector<8x1xf32>
    %112 = vector.broadcast %107 : vector<8x1xf32> to vector<8x16xf32>
    %113 = arith.subf %98, %112 : vector<8x16xf32>
    %cst_42 = arith.constant 5.000000e-02 : f32
    %114 = vector.broadcast %cst_42 : f32 to vector<8x16xf32>
    %115 = arith.mulf %113, %114 : vector<8x16xf32>
    %116 = math.exp %115 : vector<8x16xf32>
    %cst_43 = arith.constant dense<0.000000e+00> : vector<8xf32>
    %117 = vector.multi_reduction <add>, %116, %cst_43 [1] : vector<8x16xf32> to vector<8xf32>
    %118 = vector.shape_cast %117 : vector<8xf32> to vector<8x1xf32>
    %119 = arith.mulf %116, %32 : vector<8x16xf32>
    %cst_44 = arith.constant dense<0.000000e+00> : vector<8xf32>
    %120 = vector.multi_reduction <add>, %119, %cst_44 [1] : vector<8x16xf32> to vector<8xf32>
    %121 = vector.shape_cast %120 : vector<8xf32> to vector<8x1xf32>
    %122 = arith.divf %121, %118 : vector<8x1xf32>
    %cst_45 = arith.constant 0.000000e+00 : f32
    %123 = vector.broadcast %cst_45 : f32 to vector<8x1xf32>
    %124 = arith.subf %123, %122 : vector<8x1xf32>
    %cst_46 = arith.constant 4.000000e+02 : f32
    %125 = vector.broadcast %cst_46 : f32 to vector<8x1xf32>
    %126 = arith.mulf %124, %125 : vector<8x1xf32>
    %cst_47 = arith.constant 0xFF800000 : f32
    %127 = vector.broadcast %cst_47 : f32 to vector<8x1xf32>
    %128 = arith.select %7, %107, %127 : vector<8x1xi1>, vector<8x1xf32>
    %129 = arith.maximumf %95, %128 : vector<8x1xf32>
    %130 = arith.addf %96, %98 : vector<8x16xf32>
    %131 = arith.addf %97, %102 : vector<8x1xf32>
    %c0_48 = arith.constant 0 : index
    %c0_49 = arith.constant 0 : index
    %132 = vector.load %arg4[%c0_48, %c0_49] : memref<8x16xf32, #tpu.memory_space<vmem>>, vector<8x16xf32>
    %cst_50 = arith.constant 0.000000e+00 : f32
    %133 = vector.broadcast %cst_50 : f32 to vector<8x16xf32>
    %134 = arith.select %10, %132, %133 : vector<8x16xi1>, vector<8x16xf32>
    %cst_51 = arith.constant dense<0.000000e+00> : vector<8xf32>
    %135 = vector.multi_reduction <add>, %134, %cst_51 [1] : vector<8x16xf32> to vector<8xf32>
    %136 = vector.shape_cast %135 : vector<8xf32> to vector<8x1xf32>
    %cst_52 = arith.constant 0xFF800000 : f32
    %137 = vector.broadcast %cst_52 : f32 to vector<8x16xf32>
    %138 = arith.select %10, %137, %132 : vector<8x16xi1>, vector<8x16xf32>
    %cst_53 = arith.constant dense<0xFF800000> : vector<8xf32>
    %139 = vector.multi_reduction <maximumf>, %138, %cst_53 [1] : vector<8x16xf32> to vector<8xf32>
    %140 = vector.shape_cast %139 : vector<8xf32> to vector<8x1xf32>
    %141 = arith.maximumf %136, %140 : vector<8x1xf32>
    %142 = arith.cmpf oeq, %136, %141 : vector<8x1xf32>
    %143 = arith.subf %141, %140 : vector<8x1xf32>
    %cst_54 = arith.constant 0.000000e+00 : f32
    %144 = vector.broadcast %cst_54 : f32 to vector<8x1xf32>
    %145 = arith.select %142, %143, %144 : vector<8x1xi1>, vector<8x1xf32>
    %146 = vector.broadcast %141 : vector<8x1xf32> to vector<8x16xf32>
    %147 = arith.subf %132, %146 : vector<8x16xf32>
    %cst_55 = arith.constant 5.000000e-02 : f32
    %148 = vector.broadcast %cst_55 : f32 to vector<8x16xf32>
    %149 = arith.mulf %147, %148 : vector<8x16xf32>
    %150 = math.exp %149 : vector<8x16xf32>
    %cst_56 = arith.constant dense<0.000000e+00> : vector<8xf32>
    %151 = vector.multi_reduction <add>, %150, %cst_56 [1] : vector<8x16xf32> to vector<8xf32>
    %152 = vector.shape_cast %151 : vector<8xf32> to vector<8x1xf32>
    %153 = arith.mulf %150, %32 : vector<8x16xf32>
    %cst_57 = arith.constant dense<0.000000e+00> : vector<8xf32>
    %154 = vector.multi_reduction <add>, %153, %cst_57 [1] : vector<8x16xf32> to vector<8xf32>
    %155 = vector.shape_cast %154 : vector<8xf32> to vector<8x1xf32>
    %156 = arith.divf %155, %152 : vector<8x1xf32>
    %cst_58 = arith.constant 0.000000e+00 : f32
    %157 = vector.broadcast %cst_58 : f32 to vector<8x1xf32>
    %158 = arith.subf %157, %156 : vector<8x1xf32>
    %cst_59 = arith.constant 4.000000e+02 : f32
    %159 = vector.broadcast %cst_59 : f32 to vector<8x1xf32>
    %160 = arith.mulf %158, %159 : vector<8x1xf32>
    %cst_60 = arith.constant 0xFF800000 : f32
    %161 = vector.broadcast %cst_60 : f32 to vector<8x1xf32>
    %162 = arith.select %7, %141, %161 : vector<8x1xi1>, vector<8x1xf32>
    %163 = arith.maximumf %129, %162 : vector<8x1xf32>
    %164 = arith.addf %130, %132 : vector<8x16xf32>
    %165 = arith.addf %131, %136 : vector<8x1xf32>
    %c0_61 = arith.constant 0 : index
    %c0_62 = arith.constant 0 : index
    %166 = vector.load %arg5[%c0_61, %c0_62] : memref<8x16xf32, #tpu.memory_space<vmem>>, vector<8x16xf32>
    %cst_63 = arith.constant 0.000000e+00 : f32
    %167 = vector.broadcast %cst_63 : f32 to vector<8x16xf32>
    %168 = arith.select %10, %166, %167 : vector<8x16xi1>, vector<8x16xf32>
    %cst_64 = arith.constant dense<0.000000e+00> : vector<8xf32>
    %169 = vector.multi_reduction <add>, %168, %cst_64 [1] : vector<8x16xf32> to vector<8xf32>
    %170 = vector.shape_cast %169 : vector<8xf32> to vector<8x1xf32>
    %cst_65 = arith.constant 0xFF800000 : f32
    %171 = vector.broadcast %cst_65 : f32 to vector<8x16xf32>
    %172 = arith.select %10, %171, %166 : vector<8x16xi1>, vector<8x16xf32>
    %cst_66 = arith.constant dense<0xFF800000> : vector<8xf32>
    %173 = vector.multi_reduction <maximumf>, %172, %cst_66 [1] : vector<8x16xf32> to vector<8xf32>
    %174 = vector.shape_cast %173 : vector<8xf32> to vector<8x1xf32>
    %175 = arith.maximumf %170, %174 : vector<8x1xf32>
    %176 = arith.cmpf oeq, %170, %175 : vector<8x1xf32>
    %177 = arith.subf %175, %174 : vector<8x1xf32>
    %cst_67 = arith.constant 0.000000e+00 : f32
    %178 = vector.broadcast %cst_67 : f32 to vector<8x1xf32>
    %179 = arith.select %176, %177, %178 : vector<8x1xi1>, vector<8x1xf32>
    %180 = vector.broadcast %175 : vector<8x1xf32> to vector<8x16xf32>
    %181 = arith.subf %166, %180 : vector<8x16xf32>
    %cst_68 = arith.constant 5.000000e-02 : f32
    %182 = vector.broadcast %cst_68 : f32 to vector<8x16xf32>
    %183 = arith.mulf %181, %182 : vector<8x16xf32>
    %184 = math.exp %183 : vector<8x16xf32>
    %cst_69 = arith.constant dense<0.000000e+00> : vector<8xf32>
    %185 = vector.multi_reduction <add>, %184, %cst_69 [1] : vector<8x16xf32> to vector<8xf32>
    %186 = vector.shape_cast %185 : vector<8xf32> to vector<8x1xf32>
    %187 = arith.mulf %184, %32 : vector<8x16xf32>
    %cst_70 = arith.constant dense<0.000000e+00> : vector<8xf32>
    %188 = vector.multi_reduction <add>, %187, %cst_70 [1] : vector<8x16xf32> to vector<8xf32>
    %189 = vector.shape_cast %188 : vector<8xf32> to vector<8x1xf32>
    %190 = arith.divf %189, %186 : vector<8x1xf32>
    %cst_71 = arith.constant 0.000000e+00 : f32
    %191 = vector.broadcast %cst_71 : f32 to vector<8x1xf32>
    %192 = arith.subf %191, %190 : vector<8x1xf32>
    %cst_72 = arith.constant 4.000000e+02 : f32
    %193 = vector.broadcast %cst_72 : f32 to vector<8x1xf32>
    %194 = arith.mulf %192, %193 : vector<8x1xf32>
    %cst_73 = arith.constant 0xFF800000 : f32
    %195 = vector.broadcast %cst_73 : f32 to vector<8x1xf32>
    %196 = arith.select %7, %175, %195 : vector<8x1xi1>, vector<8x1xf32>
    %197 = arith.maximumf %163, %196 : vector<8x1xf32>
    %198 = arith.addf %164, %166 : vector<8x16xf32>
    %199 = arith.addf %165, %170 : vector<8x1xf32>
    %c0_74 = arith.constant 0 : index
    %c0_75 = arith.constant 0 : index
    %200 = vector.load %arg6[%c0_74, %c0_75] : memref<8x16xf32, #tpu.memory_space<vmem>>, vector<8x16xf32>
    %cst_76 = arith.constant 0.000000e+00 : f32
    %201 = vector.broadcast %cst_76 : f32 to vector<8x16xf32>
    %202 = arith.select %10, %200, %201 : vector<8x16xi1>, vector<8x16xf32>
    %cst_77 = arith.constant dense<0.000000e+00> : vector<8xf32>
    %203 = vector.multi_reduction <add>, %202, %cst_77 [1] : vector<8x16xf32> to vector<8xf32>
    %204 = vector.shape_cast %203 : vector<8xf32> to vector<8x1xf32>
    %cst_78 = arith.constant 0xFF800000 : f32
    %205 = vector.broadcast %cst_78 : f32 to vector<8x16xf32>
    %206 = arith.select %10, %205, %200 : vector<8x16xi1>, vector<8x16xf32>
    %cst_79 = arith.constant dense<0xFF800000> : vector<8xf32>
    %207 = vector.multi_reduction <maximumf>, %206, %cst_79 [1] : vector<8x16xf32> to vector<8xf32>
    %208 = vector.shape_cast %207 : vector<8xf32> to vector<8x1xf32>
    %209 = arith.maximumf %204, %208 : vector<8x1xf32>
    %210 = arith.cmpf oeq, %204, %209 : vector<8x1xf32>
    %211 = arith.subf %209, %208 : vector<8x1xf32>
    %cst_80 = arith.constant 0.000000e+00 : f32
    %212 = vector.broadcast %cst_80 : f32 to vector<8x1xf32>
    %213 = arith.select %210, %211, %212 : vector<8x1xi1>, vector<8x1xf32>
    %214 = vector.broadcast %209 : vector<8x1xf32> to vector<8x16xf32>
    %215 = arith.subf %200, %214 : vector<8x16xf32>
    %cst_81 = arith.constant 5.000000e-02 : f32
    %216 = vector.broadcast %cst_81 : f32 to vector<8x16xf32>
    %217 = arith.mulf %215, %216 : vector<8x16xf32>
    %218 = math.exp %217 : vector<8x16xf32>
    %cst_82 = arith.constant dense<0.000000e+00> : vector<8xf32>
    %219 = vector.multi_reduction <add>, %218, %cst_82 [1] : vector<8x16xf32> to vector<8xf32>
    %220 = vector.shape_cast %219 : vector<8xf32> to vector<8x1xf32>
    %221 = arith.mulf %218, %32 : vector<8x16xf32>
    %cst_83 = arith.constant dense<0.000000e+00> : vector<8xf32>
    %222 = vector.multi_reduction <add>, %221, %cst_83 [1] : vector<8x16xf32> to vector<8xf32>
    %223 = vector.shape_cast %222 : vector<8xf32> to vector<8x1xf32>
    %224 = arith.divf %223, %220 : vector<8x1xf32>
    %cst_84 = arith.constant 0.000000e+00 : f32
    %225 = vector.broadcast %cst_84 : f32 to vector<8x1xf32>
    %226 = arith.subf %225, %224 : vector<8x1xf32>
    %cst_85 = arith.constant 4.000000e+02 : f32
    %227 = vector.broadcast %cst_85 : f32 to vector<8x1xf32>
    %228 = arith.mulf %226, %227 : vector<8x1xf32>
    %cst_86 = arith.constant 0xFF800000 : f32
    %229 = vector.broadcast %cst_86 : f32 to vector<8x1xf32>
    %230 = arith.select %7, %209, %229 : vector<8x1xi1>, vector<8x1xf32>
    %231 = arith.maximumf %197, %230 : vector<8x1xf32>
    %232 = arith.addf %198, %200 : vector<8x16xf32>
    %233 = arith.addf %199, %204 : vector<8x1xf32>
    %cst_87 = arith.constant 0.166666672 : f32
    %234 = vector.broadcast %cst_87 : f32 to vector<8x16xf32>
    %235 = arith.mulf %232, %234 : vector<8x16xf32>
    %cst_88 = arith.constant 0.166666672 : f32
    %236 = vector.broadcast %cst_88 : f32 to vector<8x1xf32>
    %237 = arith.mulf %233, %236 : vector<8x1xf32>
    %cst_89 = arith.constant 0xFF800000 : f32
    %238 = vector.broadcast %cst_89 : f32 to vector<8x16xf32>
    %239 = arith.select %10, %238, %235 : vector<8x16xi1>, vector<8x16xf32>
    %cst_90 = arith.constant dense<0xFF800000> : vector<8xf32>
    %240 = vector.multi_reduction <maximumf>, %239, %cst_90 [1] : vector<8x16xf32> to vector<8xf32>
    %241 = vector.shape_cast %240 : vector<8xf32> to vector<8x1xf32>
    %242 = arith.maximumf %237, %241 : vector<8x1xf32>
    %243 = arith.cmpf oeq, %237, %242 : vector<8x1xf32>
    %244 = arith.subf %242, %241 : vector<8x1xf32>
    %cst_91 = arith.constant 0.000000e+00 : f32
    %245 = vector.broadcast %cst_91 : f32 to vector<8x1xf32>
    %246 = arith.select %243, %244, %245 : vector<8x1xi1>, vector<8x1xf32>
    %247 = vector.broadcast %242 : vector<8x1xf32> to vector<8x16xf32>
    %248 = arith.subf %235, %247 : vector<8x16xf32>
    %cst_92 = arith.constant 5.000000e-02 : f32
    %249 = vector.broadcast %cst_92 : f32 to vector<8x16xf32>
    %250 = arith.mulf %248, %249 : vector<8x16xf32>
    %251 = math.exp %250 : vector<8x16xf32>
    %cst_93 = arith.constant dense<0.000000e+00> : vector<8xf32>
    %252 = vector.multi_reduction <add>, %251, %cst_93 [1] : vector<8x16xf32> to vector<8xf32>
    %253 = vector.shape_cast %252 : vector<8xf32> to vector<8x1xf32>
    %254 = arith.mulf %251, %32 : vector<8x16xf32>
    %cst_94 = arith.constant dense<0.000000e+00> : vector<8xf32>
    %255 = vector.multi_reduction <add>, %254, %cst_94 [1] : vector<8x16xf32> to vector<8xf32>
    %256 = vector.shape_cast %255 : vector<8xf32> to vector<8x1xf32>
    %257 = arith.divf %256, %253 : vector<8x1xf32>
    %cst_95 = arith.constant 0.000000e+00 : f32
    %258 = vector.broadcast %cst_95 : f32 to vector<8x1xf32>
    %259 = arith.subf %258, %257 : vector<8x1xf32>
    %cst_96 = arith.constant 4.000000e+02 : f32
    %260 = vector.broadcast %cst_96 : f32 to vector<8x1xf32>
    %261 = arith.mulf %259, %260 : vector<8x1xf32>
    %262 = arith.maximumf %46, %77 : vector<8x1xf32>
    %263 = arith.maximumf %262, %111 : vector<8x1xf32>
    %264 = arith.maximumf %263, %145 : vector<8x1xf32>
    %265 = arith.maximumf %264, %179 : vector<8x1xf32>
    %266 = arith.maximumf %265, %213 : vector<8x1xf32>
    %267 = arith.maximumf %266, %246 : vector<8x1xf32>
    %268 = arith.subf %46, %267 : vector<8x1xf32>
    %cst_97 = arith.constant 5.000000e-01 : f32
    %269 = vector.broadcast %cst_97 : f32 to vector<8x1xf32>
    %270 = arith.mulf %268, %269 : vector<8x1xf32>
    %271 = math.exp %270 : vector<8x1xf32>
    %272 = arith.subf %77, %267 : vector<8x1xf32>
    %cst_98 = arith.constant 5.000000e-01 : f32
    %273 = vector.broadcast %cst_98 : f32 to vector<8x1xf32>
    %274 = arith.mulf %272, %273 : vector<8x1xf32>
    %275 = math.exp %274 : vector<8x1xf32>
    %276 = arith.subf %111, %267 : vector<8x1xf32>
    %cst_99 = arith.constant 5.000000e-01 : f32
    %277 = vector.broadcast %cst_99 : f32 to vector<8x1xf32>
    %278 = arith.mulf %276, %277 : vector<8x1xf32>
    %279 = math.exp %278 : vector<8x1xf32>
    %280 = arith.subf %145, %267 : vector<8x1xf32>
    %cst_100 = arith.constant 5.000000e-01 : f32
    %281 = vector.broadcast %cst_100 : f32 to vector<8x1xf32>
    %282 = arith.mulf %280, %281 : vector<8x1xf32>
    %283 = math.exp %282 : vector<8x1xf32>
    %284 = arith.subf %179, %267 : vector<8x1xf32>
    %cst_101 = arith.constant 5.000000e-01 : f32
    %285 = vector.broadcast %cst_101 : f32 to vector<8x1xf32>
    %286 = arith.mulf %284, %285 : vector<8x1xf32>
    %287 = math.exp %286 : vector<8x1xf32>
    %288 = arith.subf %213, %267 : vector<8x1xf32>
    %cst_102 = arith.constant 5.000000e-01 : f32
    %289 = vector.broadcast %cst_102 : f32 to vector<8x1xf32>
    %290 = arith.mulf %288, %289 : vector<8x1xf32>
    %291 = math.exp %290 : vector<8x1xf32>
    %292 = arith.subf %246, %267 : vector<8x1xf32>
    %cst_103 = arith.constant 5.000000e-01 : f32
    %293 = vector.broadcast %cst_103 : f32 to vector<8x1xf32>
    %294 = arith.mulf %292, %293 : vector<8x1xf32>
    %295 = math.exp %294 : vector<8x1xf32>
    %296 = arith.mulf %271, %37 : vector<8x1xf32>
    %297 = arith.subf %61, %24 : vector<8x1xf32>
    %298 = arith.mulf %296, %297 : vector<8x1xf32>
    %299 = arith.addf %271, %275 : vector<8x1xf32>
    %300 = arith.mulf %275, %68 : vector<8x1xf32>
    %301 = arith.subf %92, %24 : vector<8x1xf32>
    %302 = arith.mulf %300, %301 : vector<8x1xf32>
    %303 = arith.addf %298, %302 : vector<8x1xf32>
    %304 = arith.addf %299, %279 : vector<8x1xf32>
    %305 = arith.mulf %279, %102 : vector<8x1xf32>
    %306 = arith.subf %126, %24 : vector<8x1xf32>
    %307 = arith.mulf %305, %306 : vector<8x1xf32>
    %308 = arith.addf %303, %307 : vector<8x1xf32>
    %309 = arith.addf %304, %283 : vector<8x1xf32>
    %310 = arith.mulf %283, %136 : vector<8x1xf32>
    %311 = arith.subf %160, %24 : vector<8x1xf32>
    %312 = arith.mulf %310, %311 : vector<8x1xf32>
    %313 = arith.addf %308, %312 : vector<8x1xf32>
    %314 = arith.addf %309, %287 : vector<8x1xf32>
    %315 = arith.mulf %287, %170 : vector<8x1xf32>
    %316 = arith.subf %194, %24 : vector<8x1xf32>
    %317 = arith.mulf %315, %316 : vector<8x1xf32>
    %318 = arith.addf %313, %317 : vector<8x1xf32>
    %319 = arith.addf %314, %291 : vector<8x1xf32>
    %320 = arith.mulf %291, %204 : vector<8x1xf32>
    %321 = arith.subf %228, %24 : vector<8x1xf32>
    %322 = arith.mulf %320, %321 : vector<8x1xf32>
    %323 = arith.addf %318, %322 : vector<8x1xf32>
    %324 = arith.addf %319, %295 : vector<8x1xf32>
    %325 = arith.mulf %295, %237 : vector<8x1xf32>
    %326 = arith.subf %261, %24 : vector<8x1xf32>
    %327 = arith.mulf %325, %326 : vector<8x1xf32>
    %328 = arith.addf %323, %327 : vector<8x1xf32>
    %329 = arith.divf %328, %324 : vector<8x1xf32>
    %cst_104 = arith.constant 0.000000e+00 : f32
    %330 = vector.broadcast %cst_104 : f32 to vector<8x1xf32>
    %331 = arith.select %7, %24, %330 : vector<8x1xi1>, vector<8x1xf32>
    %332 = vector.shape_cast %331 : vector<8x1xf32> to vector<1x8x1xf32>
    %cst_105 = arith.constant dense<0.000000e+00> : vector<1xf32>
    %333 = vector.multi_reduction <add>, %332, %cst_105 [1, 2] : vector<1x8x1xf32> to vector<1xf32>
    %334 = vector.shape_cast %333 : vector<1xf32> to vector<1x1x1xf32>
    %335 = vector.extract %334[0, 0, 0] : f32 from vector<1x1x1xf32>
    %cst_106 = arith.constant 0.000000e+00 : f32
    %336 = vector.broadcast %cst_106 : f32 to vector<8x1xf32>
    %337 = arith.select %7, %329, %336 : vector<8x1xi1>, vector<8x1xf32>
    %338 = vector.shape_cast %337 : vector<8x1xf32> to vector<1x8x1xf32>
    %cst_107 = arith.constant dense<0.000000e+00> : vector<1xf32>
    %339 = vector.multi_reduction <add>, %338, %cst_107 [1, 2] : vector<1x8x1xf32> to vector<1xf32>
    %340 = vector.shape_cast %339 : vector<1xf32> to vector<1x1x1xf32>
    %341 = vector.extract %340[0, 0, 0] : f32 from vector<1x1x1xf32>
    %342 = vector.shape_cast %231 : vector<8x1xf32> to vector<1x8x1xf32>
    %cst_108 = arith.constant dense<0xFF800000> : vector<1xf32>
    %343 = vector.multi_reduction <maximumf>, %342, %cst_108 [1, 2] : vector<1x8x1xf32> to vector<1xf32>
    %344 = vector.shape_cast %343 : vector<1xf32> to vector<1x1x1xf32>
    %345 = vector.extract %344[0, 0, 0] : f32 from vector<1x1x1xf32>
    %346 = tpu.iota {dimensions = array<i32: 2>} : vector<1x8x128xi32>
    %c0_i32 = arith.constant 0 : i32
    %347 = vector.broadcast %c0_i32 : i32 to vector<1x8x128xi32>
    %348 = arith.cmpi eq, %346, %347 : vector<1x8x128xi32>
    %c1_i32 = arith.constant 1 : i32
    %349 = vector.broadcast %c1_i32 : i32 to vector<1x8x128xi32>
    %350 = arith.cmpi eq, %346, %349 : vector<1x8x128xi32>
    %c2_i32 = arith.constant 2 : i32
    %351 = vector.broadcast %c2_i32 : i32 to vector<1x8x128xi32>
    %352 = arith.cmpi eq, %346, %351 : vector<1x8x128xi32>
    %cst_109 = arith.constant 0.000000e+00 : f32
    %353 = vector.broadcast %345 : f32 to vector<1x8x128xf32>
    %354 = vector.broadcast %cst_109 : f32 to vector<1x8x128xf32>
    %355 = arith.select %352, %353, %354 : vector<1x8x128xi1>, vector<1x8x128xf32>
    %356 = vector.broadcast %341 : f32 to vector<1x8x128xf32>
    %357 = arith.select %350, %356, %355 : vector<1x8x128xi1>, vector<1x8x128xf32>
    %358 = vector.broadcast %335 : f32 to vector<1x8x128xf32>
    %359 = arith.select %348, %358, %357 : vector<1x8x128xi1>, vector<1x8x128xf32>
    %c0_110 = arith.constant 0 : index
    %c0_111 = arith.constant 0 : index
    %c0_112 = arith.constant 0 : index
    %360 = vector.load %arg9[%c0_110, %c0_111, %c0_112] : memref<1x8x128xf32, #tpu.memory_space<vmem>>, vector<1x8x128xf32>
    tpu.vector_store %arg9[%c0_110, %c0_111, %c0_112], %359 {strides = array<i32>} : memref<1x8x128xf32, #tpu.memory_space<vmem>>, vector<1x8x128xf32>,
    return
  }
  func.func @transform_0(%arg0: i32) -> (i32, i32) {
    %c0_i32 = arith.constant 0 : i32
    %c0_i32_0 = arith.constant 0 : i32
    return %arg0, %c0_i32 : i32, i32
  }
  func.func @transform_1(%arg0: i32) -> (i32, i32) {
    %c0_i32 = arith.constant 0 : i32
    %c0_i32_0 = arith.constant 0 : i32
    return %arg0, %c0_i32 : i32, i32
  }
  func.func @transform_2(%arg0: i32) -> (i32, i32) {
    %c0_i32 = arith.constant 0 : i32
    %c0_i32_0 = arith.constant 0 : i32
    return %arg0, %c0_i32 : i32, i32
  }
  func.func @transform_3(%arg0: i32) -> (i32, i32) {
    %c0_i32 = arith.constant 0 : i32
    %c0_i32_0 = arith.constant 0 : i32
    return %arg0, %c0_i32 : i32, i32
  }
  func.func @transform_4(%arg0: i32) -> (i32, i32) {
    %c0_i32 = arith.constant 0 : i32
    %c0_i32_0 = arith.constant 0 : i32
    return %arg0, %c0_i32 : i32, i32
  }
  func.func @transform_5(%arg0: i32) -> (i32, i32) {
    %c0_i32 = arith.constant 0 : i32
    %c0_i32_0 = arith.constant 0 : i32
    return %arg0, %c0_i32 : i32, i32
  }
  func.func @transform_6(%arg0: i32) -> (i32, i32) {
    %c0_i32 = arith.constant 0 : i32
    %c0_i32_0 = arith.constant 0 : i32
    return %arg0, %c0_i32 : i32, i32
  }
  func.func @transform_7(%arg0: i32) -> (i32, i32) {
    %c0_i32 = arith.constant 0 : i32
    %c0_i32_0 = arith.constant 0 : i32
    return %arg0, %c0_i32 : i32, i32
  }
  func.func @transform_8(%arg0: i32) -> (i32, i32, i32) {
    %c0_i32 = arith.constant 0 : i32
    %c0_i32_0 = arith.constant 0 : i32
    %c0_i32_1 = arith.constant 0 : i32
    return %arg0, %c0_i32, %c0_i32_0 : i32, i32, i32
  }
}

</mosaic_0001>

<llo_original>
// kernel: tpu_custom_call.1
$region0: #{tpu_custom_call.1}
  #allocation0 [shape = 'u32[]', space=smem, size = 0x4, offset = 0x4, fixed_abs, tag = 'smem constant byte address 0x4 - core index']
  #allocation1 [shape = 'u32[144,128]{1,0:T(1,128)}', space=vmem, size = 0x12000, scoped, tag = 'internal scratch']
  %s0 = inlined_call_operand.vmem [shape: f32[8,16], index: 0, kind: input, shape index: {}]
  %s1 = inlined_call_operand.hbm [shape: f32[8,16], index: 1, kind: input, shape index: {}]
  %s2 = inlined_call_operand.hbm [shape: f32[8,16], index: 2, kind: input, shape index: {}]
  %s3 = inlined_call_operand.hbm [shape: f32[8,16], index: 3, kind: input, shape index: {}]
  %s4 = inlined_call_operand.vmem [shape: f32[8,16], index: 4, kind: input, shape index: {}]
  %s5 = inlined_call_operand.hbm [shape: f32[8,16], index: 5, kind: input, shape index: {}]
  %s6 = inlined_call_operand.hbm [shape: f32[8,16], index: 6, kind: input, shape index: {}]
  %s7 = inlined_call_operand.vmem [shape: s32[8,1], index: 7, kind: input, shape index: {}]
  %s8 = inlined_call_operand.hbm [shape: f32[1,8,128], index: 8, kind: output, shape index: {}]
  %s9 = sld [smem:[#allocation0]]
  $region62: #{tpu_custom_call.1} parent=0
    _
  %s11 = ssub.s32 1, %s9
  %s12 = scalar_select 0, %s11, %s9
  $region1: #{tpu_custom_call.1} parent=0
    #allocation2 [shape = 'u8[4096]{0}', space=vmem, size = 0x1000, scoped, tag = 'input window, operand 1, single buffered']
    #allocation3 [shape = 's32[1]{0}', space=sflag, size = 0x4, scoped, tag = 'scoped memory for tpu_custom_call.1']
    #allocation4 [shape = 's32[1]{0}', space=sflag, size = 0x4, scoped, tag = 'scoped memory for tpu_custom_call.1']
    #allocation5 [shape = 'u8[4096]{0}', space=vmem, size = 0x1000, scoped, tag = 'input window, operand 2, single buffered']
    #allocation6 [shape = 's32[1]{0}', space=sflag, size = 0x4, scoped, tag = 'scoped memory for tpu_custom_call.1']
    #allocation7 [shape = 'u8[4096]{0}', space=vmem, size = 0x1000, scoped, tag = 'input window, operand 3, single buffered']
    #allocation8 [shape = 'u8[4096]{0}', space=vmem, size = 0x1000, scoped, tag = 'input window, operand 5, single buffered']
    #allocation9 [shape = 's32[1]{0}', space=sflag, size = 0x4, scoped, tag = 'scoped memory for tpu_custom_call.1']
    #allocation10 [shape = 'u8[4096]{0}', space=vmem, size = 0x1000, scoped, tag = 'input window, operand 6, single buffered']
    #allocation11 [shape = 'u8[4096]{0}', space=vmem, size = 0x1000, scoped, tag = 'output window, operand 0, single buffered']
    %13 = vsyncpa [#allocation3], 0
    %14 = vsyncpa [#allocation6], 0
    %15 = vsyncpa [#allocation9], 0
    %16 = vsyncpa [#allocation4], 0
    // Predicated region
    $region2: #{tpu_custom_call.1} parent=1 // pred_check
      _
    $region3: #{tpu_custom_call.1} parent=1 // pred_check_branch
      %18 = sbr.rel (0) target = $region5
    $region4: #{tpu_custom_call.1} parent=1 // pred_region
      _
    $region5: #{tpu_custom_call.1} parent=1 // pred_fallthru
      _
    // Predicated region
    $region6: #{tpu_custom_call.1} parent=1 // pred_check
      _
    $region7: #{tpu_custom_call.1} parent=1 // pred_check_branch
      %20 = sbr.rel (0) target = $region9
    $region8: #{tpu_custom_call.1} parent=1 // pred_region
      %s22 = ssub.s32 128, 128
      %23 = vsyncadd [#allocation3], %s22
      %s25 = sshll.u32 [#allocation2], 4
      %s26 = int_to_ptr.vmem [resolvable:$true] %s25
      %28 = dma.hbm_to_vmem [thread:$0]  %s1, 128, %s26, [#allocation3]
    $region9: #{tpu_custom_call.1} parent=1 // pred_fallthru
      _
    // Predicated region
    $region10: #{tpu_custom_call.1} parent=1 // pred_check
      _
    $region11: #{tpu_custom_call.1} parent=1 // pred_check_branch
      %30 = sbr.rel (0) target = $region13
    $region12: #{tpu_custom_call.1} parent=1 // pred_region
      %s32 = ssub.s32 128, 128
      %33 = vsyncadd [#allocation6], %s32
      %s35 = sshll.u32 [#allocation5], 4
      %s36 = int_to_ptr.vmem [resolvable:$true] %s35
      %38 = dma.hbm_to_vmem [thread:$0]  %s2, 128, %s36, [#allocation6]
    $region13: #{tpu_custom_call.1} parent=1 // pred_fallthru
      _
    // Predicated region
    $region14: #{tpu_custom_call.1} parent=1 // pred_check
      _
    $region15: #{tpu_custom_call.1} parent=1 // pred_check_branch
      %40 = sbr.rel (0) target = $region17
    $region16: #{tpu_custom_call.1} parent=1 // pred_region
      %s42 = ssub.s32 128, 128
      %43 = vsyncadd [#allocation6], %s42
      %s45 = sshll.u32 [#allocation7], 4
      %s46 = int_to_ptr.vmem [resolvable:$true] %s45
      %48 = dma.hbm_to_vmem [thread:$0]  %s3, 128, %s46, [#allocation6]
    $region17: #{tpu_custom_call.1} parent=1 // pred_fallthru
      _
    // Predicated region
    $region18: #{tpu_custom_call.1} parent=1 // pred_check
      _
    $region19: #{tpu_custom_call.1} parent=1 // pred_check_branch
      %50 = sbr.rel (0) target = $region21
    $region20: #{tpu_custom_call.1} parent=1 // pred_region
      _
    $region21: #{tpu_custom_call.1} parent=1 // pred_fallthru
      _
    // Predicated region
    $region22: #{tpu_custom_call.1} parent=1 // pred_check
      _
    $region23: #{tpu_custom_call.1} parent=1 // pred_check_branch
      %52 = sbr.rel (0) target = $region25
    $region24: #{tpu_custom_call.1} parent=1 // pred_region
      %s54 = ssub.s32 128, 128
      %55 = vsyncadd [#allocation9], %s54
      %s57 = sshll.u32 [#allocation8], 4
      %s58 = int_to_ptr.vmem [resolvable:$true] %s57
      %60 = dma.hbm_to_vmem [thread:$0]  %s5, 128, %s58, [#allocation9]
    $region25: #{tpu_custom_call.1} parent=1 // pred_fallthru
      _
    // Predicated region
    $region26: #{tpu_custom_call.1} parent=1 // pred_check
      _
    $region27: #{tpu_custom_call.1} parent=1 // pred_check_branch
      %62 = sbr.rel (0) target = $region29
    $region28: #{tpu_custom_call.1} parent=1 // pred_region
      %s64 = ssub.s32 128, 128
      %65 = vsyncadd [#allocation9], %s64
      %s67 = sshll.u32 [#allocation10], 4
      %s68 = int_to_ptr.vmem [resolvable:$true] %s67
      %70 = dma.hbm_to_vmem [thread:$0]  %s6, 128, %s68, [#allocation9]
    $region29: #{tpu_custom_call.1} parent=1 // pred_fallthru
      _
    // Predicated region
    $region30: #{tpu_custom_call.1} parent=1 // pred_check
      _
    $region31: #{tpu_custom_call.1} parent=1 // pred_check_branch
      %72 = sbr.rel (0) target = $region33
    $region32: #{tpu_custom_call.1} parent=1 // pred_region
      _
    $region33: #{tpu_custom_call.1} parent=1 // pred_fallthru
      _
    // Predicated region
    $region34: #{tpu_custom_call.1} parent=1 // pred_check
      _
    $region35: #{tpu_custom_call.1} parent=1 // pred_check_branch
      %74 = sbr.rel (0) target = $region37
    $region36: #{tpu_custom_call.1} parent=1 // pred_region
      %75 = dma.done [#allocation3], 128
    $region37: #{tpu_custom_call.1} parent=1 // pred_fallthru
      _
    // Predicated region
    $region38: #{tpu_custom_call.1} parent=1 // pred_check
      _
    $region39: #{tpu_custom_call.1} parent=1 // pred_check_branch
      %77 = sbr.rel (0) target = $region41
    $region40: #{tpu_custom_call.1} parent=1 // pred_region
      %78 = dma.done [#allocation6], 128
    $region41: #{tpu_custom_call.1} parent=1 // pred_fallthru
      _
    // Predicated region
    $region42: #{tpu_custom_call.1} parent=1 // pred_check
      _
    $region43: #{tpu_custom_call.1} parent=1 // pred_check_branch
      %80 = sbr.rel (0) target = $region45
    $region44: #{tpu_custom_call.1} parent=1 // pred_region
      %81 = dma.done [#allocation6], 128
    $region45: #{tpu_custom_call.1} parent=1 // pred_fallthru
      _
    // Predicated region
    $region46: #{tpu_custom_call.1} parent=1 // pred_check
      _
    $region47: #{tpu_custom_call.1} parent=1 // pred_check_branch
      %83 = sbr.rel (0) target = $region49
    $region48: #{tpu_custom_call.1} parent=1 // pred_region
      %84 = dma.done [#allocation9], 128
    $region49: #{tpu_custom_call.1} parent=1 // pred_fallthru
      _
    // Predicated region
    $region50: #{tpu_custom_call.1} parent=1 // pred_check
      _
    $region51: #{tpu_custom_call.1} parent=1 // pred_check_branch
      %86 = sbr.rel (0) target = $region53
    $region52: #{tpu_custom_call.1} parent=1 // pred_region
      %87 = dma.done [#allocation9], 128
    $region53: #{tpu_custom_call.1} parent=1 // pred_fallthru
      _
    %v88 = vld [vmem:[#allocation10] sm:$0xff]
    %v89 = vld [vmem:[%s7] sm:$0xff]
    %s90 = smul.u32 0, 8
    %v91 = vlaneseq
    %v92 = vshrl.u32 %v91, 7
    %v93 = vstv %s90
    %v94 = vadd.s32 %v93, %v92
    %vm95 = vcmp.lt.s32.totalorder %v94, 8
    %v96 = vlaneseq
    %v97 = vand.u32 %v96, 127
    %98 = vset.pattern.permute.xlu0 0
    %99 = vperm.xlu0 %98, %v89
    %v100 = vpop.permute.xlu0 %99
    %vm101 = vcmp.eq.s32.totalorder %v97, %v100
    %vm102 = vcmask 130048
    %v103 = vsel %vm102, %v88, -inf
    %104 = vmax.xlane.f32.xlu0 %v103
    %v105 = vpop.xlane.xlu0 %104
    %v106 = vsub.f32 %v88, %v105
    %v107 = vmul.f32 %v106, 1.442695
    %v108 = vpow.pop %v107
    %v109 = vsel %vm102, %v108, 0.0
    %110 = vadd.xlane.f32.xlu0 %v109
    %v111 = vpop.xlane.xlu0 %110
    %v112 = vlog2.pop %v111
    %v113 = vmul.f32 %v112, 0.6931472
    %v114 = vadd.f32 %v113, %v105
    %v115 = vsel %vm101, %v88, 0.0
    %v116 = vsel %vm102, %v115, 0.0
    %117 = vadd.xlane.f32.xlu0 %v116
    %v118 = vpop.xlane.xlu0 %117
    %v119 = vsub.f32 %v114, %v118
    %v120 = vmul.f32 %v106, 0.05
    %v121 = vmul.f32 %v120, 1.442695
    %v122 = vpow.pop %v121
    %v123 = vsel %vm102, %v122, 0.0
    %124 = vadd.xlane.f32.xlu0 %v123
    %v125 = vpop.xlane.xlu0 %124
    %v126 = vlog2.pop %v125
    %v127 = vmul.f32 %v126, 0.6931472
    %v128 = vsub.f32 %v120, %v127
    %v129 = vld [vmem:[%s0] sm:$0xff]
    %v130 = vsel %vm101, %v129, 0.0
    %v131 = vsel %vm102, %v130, 0.0
    %132 = vadd.xlane.f32.xlu0 %v131
    %v133 = vpop.xlane.xlu0 %132
    %v134 = vsel %vm101, -inf, %v129
    %v135 = vsel %vm102, %v134, -inf
    %136 = vmax.xlane.f32.xlu0 %v135
    %v137 = vpop.xlane.xlu0 %136
    %v138 = vmax.f32 %v133, %v137
    %vm139 = vcmp.eq.f32.partialorder %v133, %v138
    %v140 = vsub.f32 %v138, %v137
    %v141 = vsel %vm139, %v140, 0.0
    %v142 = vsub.f32 %v129, %v138
    %v143 = vmul.f32 %v142, 0.05
    %v144 = vmul.f32 %v143, 1.442695
    %v145 = vpow.pop %v144
    %v146 = vsel %vm102, %v145, 0.0
    %147 = vadd.xlane.f32.xlu0 %v146
    %v148 = vpop.xlane.xlu0 %147
    %v149 = vmul.f32 %v145, %v128
    %v150 = vsel %vm102, %v149, 0.0
    %151 = vadd.xlane.f32.xlu0 %v150
    %v152 = vpop.xlane.xlu0 %151
    %v153 = vrcp.pop %v148
    %v154 = vmul.f32 %v152, %v153
    %v155 = vsub.f32 0.0, %v154
    %v156 = vmul.f32 %v155, 400.0
    %v157 = vsel %vm95, %v138, -inf
    %v158 = vld [vmem:[#allocation2] sm:$0xff]
    %v159 = vsel %vm101, %v158, 0.0
    %v160 = vsel %vm102, %v159, 0.0
    %161 = vadd.xlane.f32.xlu0 %v160
    %v162 = vpop.xlane.xlu0 %161
    %v163 = vsel %vm101, -inf, %v158
    %v164 = vsel %vm102, %v163, -inf
    %165 = vmax.xlane.f32.xlu0 %v164
    %v166 = vpop.xlane.xlu0 %165
    %v167 = vmax.f32 %v162, %v166
    %vm168 = vcmp.eq.f32.partialorder %v162, %v167
    %v169 = vsub.f32 %v167, %v166
    %v170 = vsel %vm168, %v169, 0.0
    %v171 = vsub.f32 %v158, %v167
    %v172 = vmul.f32 %v171, 0.05
    %v173 = vmul.f32 %v172, 1.442695
    %v174 = vpow.pop %v173
    %v175 = vsel %vm102, %v174, 0.0
    %176 = vadd.xlane.f32.xlu0 %v175
    %v177 = vpop.xlane.xlu0 %176
    %v178 = vmul.f32 %v174, %v128
    %v179 = vsel %vm102, %v178, 0.0
    %180 = vadd.xlane.f32.xlu0 %v179
    %v181 = vpop.xlane.xlu0 %180
    %v182 = vrcp.pop %v177
    %v183 = vmul.f32 %v181, %v182
    %v184 = vsub.f32 0.0, %v183
    %v185 = vmul.f32 %v184, 400.0
    %v186 = vsel %vm95, %v167, -inf
    %v187 = vmax.f32 %v157, %v186
    %v188 = vadd.f32 %v129, %v158
    %v189 = vadd.f32 %v133, %v162
    %v190 = vld [vmem:[#allocation5] sm:$0xff]
    %v191 = vsel %vm101, %v190, 0.0
    %v192 = vsel %vm102, %v191, 0.0
    %193 = vadd.xlane.f32.xlu0 %v192
    %v194 = vpop.xlane.xlu0 %193
    %v195 = vsel %vm101, -inf, %v190
    %v196 = vsel %vm102, %v195, -inf
    %197 = vmax.xlane.f32.xlu0 %v196
    %v198 = vpop.xlane.xlu0 %197
    %v199 = vmax.f32 %v194, %v198
    %vm200 = vcmp.eq.f32.partialorder %v194, %v199
    %v201 = vsub.f32 %v199, %v198
    %v202 = vsel %vm200, %v201, 0.0
    %v203 = vsub.f32 %v190, %v199
    %v204 = vmul.f32 %v203, 0.05
    %v205 = vmul.f32 %v204, 1.442695
    %v206 = vpow.pop %v205
    %v207 = vsel %vm102, %v206, 0.0
    %208 = vadd.xlane.f32.xlu0 %v207
    %v209 = vpop.xlane.xlu0 %208
    %v210 = vmul.f32 %v206, %v128
    %v211 = vsel %vm102, %v210, 0.0
    %212 = vadd.xlane.f32.xlu0 %v211
    %v213 = vpop.xlane.xlu0 %212
    %v214 = vrcp.pop %v209
    %v215 = vmul.f32 %v213, %v214
    %v216 = vsub.f32 0.0, %v215
    %v217 = vmul.f32 %v216, 400.0
    %v218 = vsel %vm95, %v199, -inf
    %v219 = vmax.f32 %v187, %v218
    %v220 = vadd.f32 %v188, %v190
    %v221 = vadd.f32 %v189, %v194
    %v222 = vld [vmem:[#allocation7] sm:$0xff]
    %v223 = vsel %vm101, %v222, 0.0
    %v224 = vsel %vm102, %v223, 0.0
    %225 = vadd.xlane.f32.xlu0 %v224
    %v226 = vpop.xlane.xlu0 %225
    %v227 = vsel %vm101, -inf, %v222
    %v228 = vsel %vm102, %v227, -inf
    %229 = vmax.xlane.f32.xlu0 %v228
    %v230 = vpop.xlane.xlu0 %229
    %v231 = vmax.f32 %v226, %v230
    %vm232 = vcmp.eq.f32.partialorder %v226, %v231
    %v233 = vsub.f32 %v231, %v230
    %v234 = vsel %vm232, %v233, 0.0
    %v235 = vsub.f32 %v222, %v231
    %v236 = vmul.f32 %v235, 0.05
    %v237 = vmul.f32 %v236, 1.442695
    %v238 = vpow.pop %v237
    %v239 = vsel %vm102, %v238, 0.0
    %240 = vadd.xlane.f32.xlu0 %v239
    %v241 = vpop.xlane.xlu0 %240
    %v242 = vmul.f32 %v238, %v128
    %v243 = vsel %vm102, %v242, 0.0
    %244 = vadd.xlane.f32.xlu0 %v243
    %v245 = vpop.xlane.xlu0 %244
    %v246 = vrcp.pop %v241
    %v247 = vmul.f32 %v245, %v246
    %v248 = vsub.f32 0.0, %v247
    %v249 = vmul.f32 %v248, 400.0
    %v250 = vsel %vm95, %v231, -inf
    %v251 = vmax.f32 %v219, %v250
    %v252 = vadd.f32 %v220, %v222
    %v253 = vadd.f32 %v221, %v226
    %v254 = vld [vmem:[%s4] sm:$0xff]
    %v255 = vsel %vm101, %v254, 0.0
    %v256 = vsel %vm102, %v255, 0.0
    %257 = vadd.xlane.f32.xlu0 %v256
    %v258 = vpop.xlane.xlu0 %257
    %v259 = vsel %vm101, -inf, %v254
    %v260 = vsel %vm102, %v259, -inf
    %261 = vmax.xlane.f32.xlu0 %v260
    %v262 = vpop.xlane.xlu0 %261
    %v263 = vmax.f32 %v258, %v262
    %vm264 = vcmp.eq.f32.partialorder %v258, %v263
    %v265 = vsub.f32 %v263, %v262
    %v266 = vsel %vm264, %v265, 0.0
    %v267 = vsub.f32 %v254, %v263
    %v268 = vmul.f32 %v267, 0.05
    %v269 = vmul.f32 %v268, 1.442695
    %v270 = vpow.pop %v269
    %v271 = vsel %vm102, %v270, 0.0
    %272 = vadd.xlane.f32.xlu0 %v271
    %v273 = vpop.xlane.xlu0 %272
    %v274 = vmul.f32 %v270, %v128
    %v275 = vsel %vm102, %v274, 0.0
    %276 = vadd.xlane.f32.xlu0 %v275
    %v277 = vpop.xlane.xlu0 %276
    %v278 = vrcp.pop %v273
    %v279 = vmul.f32 %v277, %v278
    %v280 = vsub.f32 0.0, %v279
    %v281 = vmul.f32 %v280, 400.0
    %v282 = vsel %vm95, %v263, -inf
    %v283 = vmax.f32 %v251, %v282
    %v284 = vadd.f32 %v252, %v254
    %v285 = vadd.f32 %v253, %v258
    %v286 = vld [vmem:[#allocation8] sm:$0xff]
    %v287 = vsel %vm101, %v286, 0.0
    %v288 = vsel %vm102, %v287, 0.0
    %289 = vadd.xlane.f32.xlu0 %v288
    %v290 = vpop.xlane.xlu0 %289
    %v291 = vsel %vm101, -inf, %v286
    %v292 = vsel %vm102, %v291, -inf
    %293 = vmax.xlane.f32.xlu0 %v292
    %v294 = vpop.xlane.xlu0 %293
    %v295 = vmax.f32 %v290, %v294
    %vm296 = vcmp.eq.f32.partialorder %v290, %v295
    %v297 = vsub.f32 %v295, %v294
    %v298 = vsel %vm296, %v297, 0.0
    %v299 = vsub.f32 %v286, %v295
    %v300 = vmul.f32 %v299, 0.05
    %v301 = vmul.f32 %v300, 1.442695
    %v302 = vpow.pop %v301
    %v303 = vsel %vm102, %v302, 0.0
    %304 = vadd.xlane.f32.xlu0 %v303
    %v305 = vpop.xlane.xlu0 %304
    %v306 = vmul.f32 %v302, %v128
    %v307 = vsel %vm102, %v306, 0.0
    %308 = vadd.xlane.f32.xlu0 %v307
    %v309 = vpop.xlane.xlu0 %308
    %v310 = vrcp.pop %v305
    %v311 = vmul.f32 %v309, %v310
    %v312 = vsub.f32 0.0, %v311
    %v313 = vmul.f32 %v312, 400.0
    %v314 = vsel %vm95, %v295, -inf
    %v315 = vmax.f32 %v283, %v314
    %v316 = vadd.f32 %v284, %v286
    %v317 = vadd.f32 %v285, %v290
    %v318 = vmul.f32 %v316, 0.16666667
    %v319 = vmul.f32 %v317, 0.16666667
    %v320 = vsel %vm101, -inf, %v318
    %v321 = vsel %vm102, %v320, -inf
    %322 = vmax.xlane.f32.xlu0 %v321
    %v323 = vpop.xlane.xlu0 %322
    %v324 = vmax.f32 %v319, %v323
    %vm325 = vcmp.eq.f32.partialorder %v319, %v324
    %v326 = vsub.f32 %v324, %v323
    %v327 = vsel %vm325, %v326, 0.0
    %v328 = vsub.f32 %v318, %v324
    %v329 = vmul.f32 %v328, 0.05
    %v330 = vmul.f32 %v329, 1.442695
    %v331 = vpow.pop %v330
    %v332 = vsel %vm102, %v331, 0.0
    %333 = vadd.xlane.f32.xlu0 %v332
    %v334 = vpop.xlane.xlu0 %333
    %v335 = vmul.f32 %v331, %v128
    %v336 = vsel %vm102, %v335, 0.0
    %337 = vadd.xlane.f32.xlu0 %v336
    %v338 = vpop.xlane.xlu0 %337
    %v339 = vrcp.pop %v334
    %v340 = vmul.f32 %v338, %v339
    %v341 = vsub.f32 0.0, %v340
    %v342 = vmul.f32 %v341, 400.0
    %v343 = vmax.f32 %v141, %v170
    %v344 = vmax.f32 %v343, %v202
    %v345 = vmax.f32 %v344, %v234
    %v346 = vmax.f32 %v345, %v266
    %v347 = vmax.f32 %v346, %v298
    %v348 = vmax.f32 %v347, %v327
    %v349 = vsub.f32 %v141, %v348
    %v350 = vmul.f32 %v349, 0.5
    %v351 = vmul.f32 %v350, 1.442695
    %v352 = vpow.pop %v351
    %v353 = vsub.f32 %v170, %v348
    %v354 = vmul.f32 %v353, 0.5
    %v355 = vmul.f32 %v354, 1.442695
    %v356 = vpow.pop %v355
    %v357 = vsub.f32 %v202, %v348
    %v358 = vmul.f32 %v357, 0.5
    %v359 = vmul.f32 %v358, 1.442695
    %v360 = vpow.pop %v359
    %v361 = vsub.f32 %v234, %v348
    %v362 = vmul.f32 %v361, 0.5
    %v363 = vmul.f32 %v362, 1.442695
    %v364 = vpow.pop %v363
    %v365 = vsub.f32 %v266, %v348
    %v366 = vmul.f32 %v365, 0.5
    %v367 = vmul.f32 %v366, 1.442695
    %v368 = vpow.pop %v367
    %v369 = vsub.f32 %v298, %v348
    %v370 = vmul.f32 %v369, 0.5
    %v371 = vmul.f32 %v370, 1.442695
    %v372 = vpow.pop %v371
    %v373 = vsub.f32 %v327, %v348
    %v374 = vmul.f32 %v373, 0.5
    %v375 = vmul.f32 %v374, 1.442695
    %v376 = vpow.pop %v375
    %v377 = vmul.f32 %v352, %v133
    %v378 = vsub.f32 %v156, %v119
    %v379 = vmul.f32 %v377, %v378
    %v380 = vadd.f32 %v352, %v356
    %v381 = vmul.f32 %v356, %v162
    %v382 = vsub.f32 %v185, %v119
    %v383 = vmul.f32 %v381, %v382
    %v384 = vadd.f32 %v379, %v383
    %v385 = vadd.f32 %v380, %v360
    %v386 = vmul.f32 %v360, %v194
    %v387 = vsub.f32 %v217, %v119
    %v388 = vmul.f32 %v386, %v387
    %v389 = vadd.f32 %v384, %v388
    %v390 = vadd.f32 %v385, %v364
    %v391 = vmul.f32 %v364, %v226
    %v392 = vsub.f32 %v249, %v119
    %v393 = vmul.f32 %v391, %v392
    %v394 = vadd.f32 %v389, %v393
    %v395 = vadd.f32 %v390, %v368
    %v396 = vmul.f32 %v368, %v258
    %v397 = vsub.f32 %v281, %v119
    %v398 = vmul.f32 %v396, %v397
    %v399 = vadd.f32 %v394, %v398
    %v400 = vadd.f32 %v395, %v372
    %v401 = vmul.f32 %v372, %v290
    %v402 = vsub.f32 %v313, %v119
    %v403 = vmul.f32 %v401, %v402
    %v404 = vadd.f32 %v399, %v403
    %v405 = vadd.f32 %v400, %v376
    %v406 = vmul.f32 %v376, %v319
    %v407 = vsub.f32 %v342, %v119
    %v408 = vmul.f32 %v406, %v407
    %v409 = vadd.f32 %v404, %v408
    %v410 = vrcp.pop %v405
    %v411 = vmul.f32 %v409, %v410
    %v412 = vsel %vm95, %v119, 0.0
    %vm413 = vcmask 7168
    %v414 = vsel %vm413, %v412, 0.0
    %415 = vadd.xlane.f32.xlu0 %v414
    %v416 = vpop.xlane.xlu0 %415
    %v417 = vrot.slane %v416, 4
    %v418 = vadd.f32 %v416, %v417
    %v419 = vrot.slane %v418, 2
    %v420 = vadd.f32 %v418, %v419
    %v421 = vrot.slane %v420, 1
    %v422 = vadd.f32 %v420, %v421
    %s423 = vtos %v422
    %v424 = vsel %vm95, %v411, 0.0
    %v425 = vsel %vm413, %v424, 0.0
    %426 = vadd.xlane.f32.xlu0 %v425
    %v427 = vpop.xlane.xlu0 %426
    %v428 = vrot.slane %v427, 4
    %v429 = vadd.f32 %v427, %v428
    %v430 = vrot.slane %v429, 2
    %v431 = vadd.f32 %v429, %v430
    %v432 = vrot.slane %v431, 1
    %v433 = vadd.f32 %v431, %v432
    %s434 = vtos %v433
    %v435 = vrot.slane %v315, 4
    %v436 = vmax.f32 %v315, %v435
    %v437 = vrot.slane %v436, 2
    %v438 = vmax.f32 %v436, %v437
    %v439 = vrot.slane %v438, 1
    %v440 = vmax.f32 %v438, %v439
    %s441 = vtos %v440
    %vm442 = vcmp.eq.s32.totalorder %v97, 0
    %vm443 = vcmp.eq.s32.totalorder %v97, 1
    %vm444 = vcmp.eq.s32.totalorder %v97, 2
    %v445 = vstv %s441
    %v446 = vsel %vm444, %v445, 0.0
    %v447 = vstv %s434
    %v448 = vsel %vm443, %v447, %v446
    %v449 = vstv %s423
    %v450 = vsel %vm442, %v449, %v448
    %451 = vst [vmem:[#allocation11] sm:$0xff] %v450
    // Predicated region
    $region54: #{tpu_custom_call.1} parent=1 // pred_check
      _
    $region55: #{tpu_custom_call.1} parent=1 // pred_check_branch
      %453 = sbr.rel (0) target = $region57
    $region56: #{tpu_custom_call.1} parent=1 // pred_region
      %s455 = ssub.s32 128, 128
      %456 = vsyncadd [#allocation4], %s455
      %s458 = sshll.u32 [#allocation11], 4
      %s459 = int_to_ptr.vmem [resolvable:$true] %s458
      %461 = dma.vmem_to_hbm [thread:$0]  %s459, 128, %s8, [#allocation4]
    $region57: #{tpu_custom_call.1} parent=1 // pred_fallthru
      _
    // Predicated region
    $region58: #{tpu_custom_call.1} parent=1 // pred_check
      _
    $region59: #{tpu_custom_call.1} parent=1 // pred_check_branch
      %463 = sbr.rel (0) target = $region61
    $region60: #{tpu_custom_call.1} parent=1 // pred_region
      %464 = dma.done [#allocation4], 128
    $region61: #{tpu_custom_call.1} parent=1 // pred_fallthru
      _
    %465 = vsyncpa [#allocation3], 1
    %466 = vsyncpa [#allocation6], 1
    %467 = vsyncpa [#allocation9], 1
    %468 = vsyncpa [#allocation4], 1

</llo_original>
